<compile_context>
chip_gen: v7x
topology: tpu7x:2x2x1
jax: 0.10.0
libtpu: 0.0.40
codegen_flags: <defaults>
</compile_context>

<pallas_src>
import functools
import math

import jax
import jax.numpy as jnp
from jax.experimental import pallas as pl
from jax.experimental.pallas import tpu as pltpu


def _tile(dim: int, preferred: int) -> int:
    """Largest tile <= preferred that evenly divides dim (full dim if small)."""
    if dim <= preferred:
        return dim
    for t in (preferred, 512, 256, 128, 64, 32, 16, 8):
        if t <= preferred and dim % t == 0:
            return t
    return dim  # TODO(synk): pad awkward sizes instead of a full-extent tile.


# ----------------------------------------------------------------------------- #
# Kernel 1: tiled bias-free linear  y = x @ W.T
#   x: (M, K), W: (O, K)  (PyTorch nn.Linear layout)  ->  y: (M, O)
# ----------------------------------------------------------------------------- #
def _linear_kernel(x_ref, w_ref, o_ref, acc_ref):
    # x_ref: (tm, tk), w_ref: (tn, tk), o_ref: (tm, tn), acc_ref: (tm, tn) f32
    @pl.when(pl.program_id(2) == 0)
    def _init():
        acc_ref[...] = jnp.zeros_like(acc_ref)

    # Contract the last dims of both operands -> no materialized W transpose.
    acc_ref[...] += jax.lax.dot_general(
        x_ref[...], w_ref[...],
        dimension_numbers=(((1,), (1,)), ((), ())),
        preferred_element_type=jnp.float32)

    @pl.when(pl.program_id(2) == pl.num_programs(2) - 1)
    def _done():
        o_ref[...] = acc_ref[...].astype(o_ref.dtype)


def linear_nobias(x2d: jax.Array, w: jax.Array, *,
                  out_dtype=jnp.float32, compute_dtype=jnp.bfloat16,
                  tm: int = 256, tn: int = 256, tk: int = 512) -> jax.Array:
    """x2d: (M, in_features), w: (out_features, in_features) -> (M, out_features)."""
    M, K = x2d.shape
    O, K2 = w.shape
    assert K == K2, (x2d.shape, w.shape)

    if compute_dtype is not None:
        x2d = x2d.astype(compute_dtype)
        w = w.astype(compute_dtype)

    tm, tn, tk = _tile(M, tm), _tile(O, tn), _tile(K, tk)
    grid = (M // tm, O // tn, K // tk)

    in_item = jnp.dtype(x2d.dtype).itemsize
    cost = pl.CostEstimate(
        flops=2 * M * K * O,
        transcendentals=0,
        bytes_accessed=(M * K + O * K) * in_item
        + M * O * jnp.dtype(out_dtype).itemsize,
    )

    return pl.pallas_call(
        _linear_kernel,
        out_shape=jax.ShapeDtypeStruct((M, O), out_dtype),
        grid=grid,
        in_specs=[
            pl.BlockSpec((tm, tk), lambda i, j, k: (i, k)),
            pl.BlockSpec((tn, tk), lambda i, j, k: (j, k)),
        ],
        out_specs=pl.BlockSpec((tm, tn), lambda i, j, k: (i, j)),
        scratch_shapes=[pltpu.VMEM((tm, tn), jnp.float32)],
        compiler_params=pltpu.CompilerParams(
            dimension_semantics=("parallel", "parallel", "arbitrary")),
        cost_estimate=cost,
    )(x2d, w)


# ----------------------------------------------------------------------------- #
# Kernel 2: attention for one (batch, query-tile) block, all heads in-kernel.
#   q block: (tq, H, D);  k/v blocks: (S, H, D);  optional additive mask (tq, S)
# ----------------------------------------------------------------------------- #
def _attn_kernel(*refs, n_heads, scale, has_mask):
    if has_mask:
        q_ref, k_ref, v_ref, mask_ref, o_ref = refs
        mask = mask_ref[...]                        # (tq, S) f32 additive
    else:
        q_ref, k_ref, v_ref, o_ref = refs
        mask = None

    # Fold 1/sqrt(head_dim) into q: scales tq*H*D elements instead of tq*S per head.
    q = q_ref[...] * jnp.asarray(scale, dtype=q_ref.dtype)
    k = k_ref[...]
    v = v_ref[...]

    # Per-head loop is unrolled at trace time (n_heads is small); only one
    # head's (tq, S) score/prob tile is live at a time.
    for h in range(n_heads):
        q_h = q[:, h, :]            # (tq, D)
        k_h = k[:, h, :]            # (S, D)
        v_h = v[:, h, :]            # (S, D)

        # q @ k^T without materializing k.T: contract last dims of both.
        s = jax.lax.dot_general(
            q_h, k_h, dimension_numbers=(((1,), (1,)), ((), ())),
            preferred_element_type=jnp.float32)          # (tq, S) f32
        if mask is not None:
            s = s + mask

        # Numerically-stable softmax; divide -> EUP reciprocal + VPU multiply.
        s = s - jnp.max(s, axis=-1, keepdims=True)
        p = jnp.exp(s)
        denom = jnp.sum(p, axis=-1, keepdims=True)
        p = p * pl.reciprocal(denom, approx=True)

        o_h = jnp.dot(p.astype(v_h.dtype), v_h,
                      preferred_element_type=jnp.float32)  # (tq, D) f32
        o_ref[:, h, :] = o_h.astype(o_ref.dtype)


def attention_core(qkv5: jax.Array, mask, *, head_dim: int,
                   tq_pref: int = 256) -> jax.Array:
    """qkv5: (B, S, 3, H, D) fused q/k/v; mask: (S, S) additive or None.

    Returns (B, S, H, D) in qkv5.dtype (no head transposes outside the kernel).
    """
    B, S, three, H, D = qkv5.shape
    assert three == 3 and D == head_dim
    tq = _tile(S, tq_pref)
    nq = S // tq
    scale = 1.0 / math.sqrt(head_dim)
    has_mask = mask is not None

    q_spec = pl.BlockSpec((None, tq, None, H, D), lambda b, i: (b, i, 0, 0, 0))
    k_spec = pl.BlockSpec((None, S, None, H, D), lambda b, i: (b, 0, 1, 0, 0))
    v_spec = pl.BlockSpec((None, S, None, H, D), lambda b, i: (b, 0, 2, 0, 0))
    in_specs = [q_spec, k_spec, v_spec]
    operands = [qkv5, qkv5, qkv5]
    if has_mask:
        in_specs.append(pl.BlockSpec((tq, S), lambda b, i: (i, 0)))
        operands.append(mask.astype(jnp.float32))

    item = jnp.dtype(qkv5.dtype).itemsize
    mask_bytes = nq * B * S * S * 4 if has_mask else 0
    cost = pl.CostEstimate(
        flops=4 * B * H * S * S * D,
        transcendentals=B * H * S * S,                       # exp
        bytes_accessed=(B * S * H * D                        # q once
                        + 2 * nq * B * S * H * D             # k/v per q tile
                        + B * S * H * D) * item              # output
        + mask_bytes,
    )

    kernel = functools.partial(_attn_kernel, n_heads=H, scale=scale,
                               has_mask=has_mask)
    return pl.pallas_call(
        kernel,
        out_shape=jax.ShapeDtypeStruct((B, S, H, D), qkv5.dtype),
        grid=(B, nq),
        in_specs=in_specs,
        out_specs=pl.BlockSpec((None, tq, H, D), lambda b, i: (b, i, 0, 0)),
        compiler_params=pltpu.CompilerParams(
            dimension_semantics=("parallel", "parallel")),
        cost_estimate=cost,
    )(*operands)


# ----------------------------------------------------------------------------- #
# Module wrapper reproducing MultiHeadAttention.forward
# ----------------------------------------------------------------------------- #
def multi_head_attention(in_token: jax.Array,
                         wq: jax.Array, wk: jax.Array,
                         wv: jax.Array, wo: jax.Array,
                         n_heads: int,
                         mask: jax.Array | None = None,
                         compute_dtype=jnp.bfloat16) -> jax.Array:
    bsz, seqlen, dim = in_token.shape
    assert dim % n_heads == 0
    head_dim = dim // n_heads

    # Fused QKV projection: one tiled matmul (activation read once, wider N).
    wqkv = jnp.concatenate([wq, wk, wv], axis=0)              # (3*dim, dim)
    x2d = in_token.reshape(bsz * seqlen, dim)
    qkv = linear_nobias(x2d, wqkv, out_dtype=compute_dtype,
                        compute_dtype=compute_dtype)          # (B*S, 3*dim)

    # Free reshape to (B, S, 3, H, D); attention BlockSpecs index q/k/v and
    # heads directly, so there is no (B,S,H,D)->(B,H,S,D) HBM transpose.
    qkv5 = qkv.reshape(bsz, seqlen, 3, n_heads, head_dim)

    attn = attention_core(qkv5, mask, head_dim=head_dim)      # (B, S, H, D)

    out2d = attn.reshape(bsz * seqlen, n_heads * head_dim)    # free reshape
    out = linear_nobias(out2d, wo, out_dtype=jnp.float32,
                        compute_dtype=compute_dtype)          # (B*S, dim)
    return out.reshape(bsz, seqlen, dim)


# Pure-JAX (float32) reference for correctness checking.
def _reference(in_token, wq, wk, wv, wo, n_heads, mask=None):
    bsz, seqlen, dim = in_token.shape
    head_dim = dim // n_heads

    def proj(w):
        return (in_token @ w.T).reshape(bsz, seqlen, n_heads,
                                        head_dim).transpose(0, 2, 1, 3)

    q, k, v = proj(wq), proj(wk), proj(wv)
    scores = jnp.einsum("bhqd,bhkd->bhqk", q, k) / math.sqrt(head_dim)
    if mask is not None:
        scores = scores + mask
    scores = jax.nn.softmax(scores, axis=-1)
    out = jnp.einsum("bhqk,bhkd->bhqd", scores, v)
    out = out.transpose(0, 2, 1, 3).reshape(bsz, seqlen, dim)
    return out @ wo.T


if __name__ == "__main__":
    # Small shapes consistent with the module: batch=2, seq=8, dim=32, heads=4.
    batch, seqlen, dim, n_heads = 2, 8, 32, 4

    key = jax.random.PRNGKey(0)
    kx, kq, kk, kv, ko = jax.random.split(key, 5)

    x = jax.random.normal(kx, (batch, seqlen, dim), dtype=jnp.float32)
    wscale = 1.0 / math.sqrt(dim)
    wq = wscale * jax.random.normal(kq, (dim, dim), dtype=jnp.float32)
    wk = wscale * jax.random.normal(kk, (dim, dim), dtype=jnp.float32)
    wv = wscale * jax.random.normal(kv, (dim, dim), dtype=jnp.float32)
    wo = wscale * jax.random.normal(ko, (dim, dim), dtype=jnp.float32)

    # Causal additive mask (same role as the optional `mask` tensor in forward).
    causal = jnp.where(
        jnp.tril(jnp.ones((seqlen, seqlen), dtype=bool)), 0.0, -1e9
    ).astype(jnp.float32)

    # Masked path.
    out = multi_head_attention(x, wq, wk, wv, wo, n_heads, mask=causal)
    out = jax.block_until_ready(out)
    ref = _reference(x, wq, wk, wv, wo, n_heads, mask=causal)
    assert out.shape == (batch, seqlen, dim)
    # bf16 MXU inputs with f32 accumulation -> loose-but-safe tolerance.
    assert jnp.allclose(out, ref, atol=5e-2, rtol=5e-2), float(
        jnp.max(jnp.abs(out - ref)))

    # mask=None path (no zero-mask tensor is materialized or added).
    out_nm = multi_head_attention(x, wq, wk, wv, wo, n_heads, mask=None)
    out_nm = jax.block_until_ready(out_nm)
    ref_nm = _reference(x, wq, wk, wv, wo, n_heads, mask=None)
    assert jnp.allclose(out_nm, ref_nm, atol=5e-2, rtol=5e-2), float(
        jnp.max(jnp.abs(out_nm - ref_nm)))

    print("KERNEL_OK")
</pallas_src>

<mosaic_0001>
module attributes {stable_mosaic.version = 11 : i64} {
  func.func @_linear_kernel(%arg0: i32, %arg1: i32, %arg2: i32, %arg3: memref<16x32xbf16, #tpu.memory_space<vmem>>, %arg4: memref<96x32xbf16, #tpu.memory_space<vmem>>, %arg5: memref<16x96xbf16, #tpu.memory_space<vmem>>, %arg6: memref<16x96xf32, #tpu.memory_space<vmem>>) attributes {dimension_semantics = [#tpu.dimension_semantics<parallel>, #tpu.dimension_semantics<parallel>, #tpu.dimension_semantics<arbitrary>], iteration_bounds = array<i64: 1, 1, 1>, scalar_prefetch = 0 : i64, scratch_operands = 1 : i64, tpu.core_type = #tpu.core_type<tc>, window_params = [{transform_indices = @transform_0, window_bounds = array<i64: 16, 32>}, {transform_indices = @transform_1, window_bounds = array<i64: 96, 32>}, {transform_indices = @transform_2, window_bounds = array<i64: 16, 96>}]} {
    %c0_i32 = arith.constant 0 : i32
    %0 = arith.cmpi eq, %arg2, %c0_i32 : i32
    %1 = arith.extui %0 : i1 to i32
    %c0_i32_0 = arith.constant 0 : i32
    %2 = arith.cmpi ne, %1, %c0_i32_0 : i32
    scf.if %2 {
      %cst_10 = arith.constant 0.000000e+00 : f32
      %12 = vector.broadcast %cst_10 : f32 to vector<16x96xf32>
      %c0_11 = arith.constant 0 : index
      %c0_12 = arith.constant 0 : index
      %13 = vector.load %arg6[%c0_11, %c0_12] : memref<16x96xf32, #tpu.memory_space<vmem>>, vector<16x96xf32>
      tpu.vector_store %arg6[%c0_11, %c0_12], %12 {strides = array<i32>} : memref<16x96xf32, #tpu.memory_space<vmem>>, vector<16x96xf32>,
    } else {
    }
    %c0 = arith.constant 0 : index
    %c0_1 = arith.constant 0 : index
    %3 = vector.load %arg6[%c0, %c0_1] : memref<16x96xf32, #tpu.memory_space<vmem>>, vector<16x96xf32>
    %c0_2 = arith.constant 0 : index
    %c0_3 = arith.constant 0 : index
    %4 = vector.load %arg3[%c0_2, %c0_3] : memref<16x32xbf16, #tpu.memory_space<vmem>>, vector<16x32xbf16>
    %c0_4 = arith.constant 0 : index
    %c0_5 = arith.constant 0 : index
    %5 = vector.load %arg4[%c0_4, %c0_5] : memref<96x32xbf16, #tpu.memory_space<vmem>>, vector<96x32xbf16>
    %cst = arith.constant dense<0.000000e+00> : vector<16x96xf32>
    %6 = tpu.matmul %4, %5, %cst {dimension_numbers = #tpu.dot_dimension_numbers<[1], [1], [0], [0], [0, 0, 1, 0], [], []>} : vector<16x32xbf16>, vector<96x32xbf16>, vector<16x96xf32> -> vector<16x96xf32>
    %7 = arith.addf %3, %6 : vector<16x96xf32>
    %c0_6 = arith.constant 0 : index
    %c0_7 = arith.constant 0 : index
    %8 = vector.load %arg6[%c0_6, %c0_7] : memref<16x96xf32, #tpu.memory_space<vmem>>, vector<16x96xf32>
    tpu.vector_store %arg6[%c0_6, %c0_7], %7 {strides = array<i32>} : memref<16x96xf32, #tpu.memory_space<vmem>>, vector<16x96xf32>,
    %c0_i32_8 = arith.constant 0 : i32
    %9 = arith.cmpi eq, %arg2, %c0_i32_8 : i32
    %10 = arith.extui %9 : i1 to i32
    %c0_i32_9 = arith.constant 0 : i32
    %11 = arith.cmpi ne, %10, %c0_i32_9 : i32
    scf.if %11 {
      %c0_10 = arith.constant 0 : index
      %c0_11 = arith.constant 0 : index
      %12 = vector.load %arg6[%c0_10, %c0_11] : memref<16x96xf32, #tpu.memory_space<vmem>>, vector<16x96xf32>
      %13 = arith.truncf %12 : vector<16x96xf32> to vector<16x96xbf16>
      %c0_12 = arith.constant 0 : index
      %c0_13 = arith.constant 0 : index
      %14 = vector.load %arg5[%c0_12, %c0_13] : memref<16x96xbf16, #tpu.memory_space<vmem>>, vector<16x96xbf16>
      tpu.vector_store %arg5[%c0_12, %c0_13], %13 {strides = array<i32>} : memref<16x96xbf16, #tpu.memory_space<vmem>>, vector<16x96xbf16>,
    } else {
    }
    return
  }
  func.func @transform_0(%arg0: i32, %arg1: i32, %arg2: i32) -> (i32, i32) {
    %c0_i32 = arith.constant 0 : i32
    return %arg0, %arg2 : i32, i32
  }
  func.func @transform_1(%arg0: i32, %arg1: i32, %arg2: i32) -> (i32, i32) {
    %c0_i32 = arith.constant 0 : i32
    return %arg1, %arg2 : i32, i32
  }
  func.func @transform_2(%arg0: i32, %arg1: i32, %arg2: i32) -> (i32, i32) {
    %c0_i32 = arith.constant 0 : i32
    return %arg0, %arg1 : i32, i32
  }
}

</mosaic_0001>

<llo_original>
// kernel: tpu_custom_call.1
$region0: #{tpu_custom_call.1}
  #allocation0 [shape = 'u32[]', space=smem, size = 0x4, offset = 0x4, fixed_abs, tag = 'smem constant byte address 0x4 - core index']
  #allocation1 [shape = 'u32[144,128]{1,0:T(1,128)}', space=vmem, size = 0x12000, scoped, tag = 'internal scratch']
  #allocation2 [shape = 'f32[16,96]{1,0:T(8,128)}', space=vmem, size = 0x2000, scoped, tag = 'scratch operand']
  %s0 = inlined_call_operand.vmem [shape: bf16[16,32], index: 0, kind: input, shape index: {}]
  %s1 = inlined_call_operand.vmem [shape: bf16[96,32], index: 1, kind: input, shape index: {}]
  %s2 = inlined_call_operand.hbm [shape: bf16[16,96], index: 2, kind: output, shape index: {}]
  %s3 = sld [smem:[#allocation0]]
  $region26: #{tpu_custom_call.1} parent=0
    _
  %s5 = ssub.s32 1, %s3
  %s6 = scalar_select 0, %s5, %s3
  $region1: #{tpu_custom_call.1} parent=0
    #allocation3 [shape = 'u8[4096]{0}', space=vmem, size = 0x1000, scoped, tag = 'output window, operand 0, single buffered']
    #allocation4 [shape = 's32[1]{0}', space=sflag, size = 0x4, scoped, tag = 'scoped memory for tpu_custom_call.1']
    %7 = vsyncpa [#allocation4], 0
    // Predicated region
    $region2: #{tpu_custom_call.1} parent=1 // pred_check
      _
    $region3: #{tpu_custom_call.1} parent=1 // pred_check_branch
      %9 = sbr.rel (0) target = $region5
    $region4: #{tpu_custom_call.1} parent=1 // pred_region
      _
    $region5: #{tpu_custom_call.1} parent=1 // pred_fallthru
      _
    // Predicated region
    $region6: #{tpu_custom_call.1} parent=1 // pred_check
      _
    $region7: #{tpu_custom_call.1} parent=1 // pred_check_branch
      %11 = sbr.rel (0) target = $region9
    $region8: #{tpu_custom_call.1} parent=1 // pred_region
      _
    $region9: #{tpu_custom_call.1} parent=1 // pred_fallthru
      _
    %p13 = scmp.eq.s32.totalorder 0, 0
    // Predicated region
    $region10: #{tpu_custom_call.1} parent=1 // pred_check
      %p14 = pneg %p13
    $region11: #{tpu_custom_call.1} parent=1 // pred_check_branch
      %16 = sbr.rel (%p14) target = $region13
    $region12: #{tpu_custom_call.1} parent=1 // pred_region
      %vm17 = vcmask 785408
      %18 = vst.msk [vmem:[#allocation2] sm:$0xff] %vm17, 0.0
      %19 = vst.msk [vmem:[#allocation2 + $0x8] sm:$0xff] %vm17, 0.0
    $region13: #{tpu_custom_call.1} parent=1 // pred_fallthru
      _
    %v20 = vld [vmem:[#allocation2] sm:$0xff]
    %v21 = vld [vmem:[#allocation2 + $0x8] sm:$0xff]
    %v22 = vld [vmem:[%s0] sm:$0xf]
    %v23 = vld [vmem:[%s0 + $0x4] sm:$0xf]
    %v24 = vld [vmem:[%s1] sm:$0xf]
    %v25 = vld [vmem:[%s1 + $0x4] sm:$0xf]
    %v26 = vld [vmem:[%s1 + $0x8] sm:$0xf]
    %v27 = vld [vmem:[%s1 + $0xc] sm:$0xf]
    %v28 = vld [vmem:[%s1 + $0x10] sm:$0xf]
    %v29 = vld [vmem:[%s1 + $0x14] sm:$0xf]
    %v30 = vld [vmem:[%s1 + $0x18] sm:$0xf]
    %v31 = vld [vmem:[%s1 + $0x1c] sm:$0xf]
    %v32 = vld [vmem:[%s1 + $0x20] sm:$0xf]
    %v33 = vld [vmem:[%s1 + $0x24] sm:$0xf]
    %v34 = vld [vmem:[%s1 + $0x28] sm:$0xf]
    %v35 = vld [vmem:[%s1 + $0x2c] sm:$0xf]
    %v38 = vunpack.c.l.b16 %v22
    %v39 = vunpack.c.l.b16 %v23
    %v40 = vpack.c.b16 %v39, %v38
    %v53 = vunpack.c.l.b16 %v24
    %v54 = vunpack.c.l.b16 %v25
    %v55 = vunpack.c.l.b16 %v26
    %v56 = vunpack.c.l.b16 %v27
    %v57 = vunpack.c.l.b16 %v28
    %v58 = vunpack.c.l.b16 %v29
    %v59 = vunpack.c.l.b16 %v30
    %v60 = vunpack.c.l.b16 %v31
    %v61 = vunpack.c.l.b16 %v32
    %v62 = vunpack.c.l.b16 %v33
    %v63 = vunpack.c.l.b16 %v34
    %v64 = vunpack.c.l.b16 %v35
    %v65 = vpack.c.b16 %v54, %v53
    %v66 = vpack.c.b16 %v56, %v55
    %v67 = vpack.c.b16 %v58, %v57
    %v68 = vpack.c.b16 %v60, %v59
    %v69 = vpack.c.b16 %v62, %v61
    %v70 = vpack.c.b16 %v64, %v63
    %vm71 = vcmask 261120
    %v73 = vsel %vm71, %v40, 0
    %v76 = vsel %vm71, %v65, 0
    %v79 = vsel %vm71, %v66, 0
    %v82 = vsel %vm71, %v67, 0
    %v85 = vsel %vm71, %v68, 0
    %v88 = vsel %vm71, %v69, 0
    %v91 = vsel %vm71, %v70, 0
    %93 = vmatprep.subr.bf16.mxu0 0
    %94 = vmatpush1.bf16.xpose.msra.mxu0 %v76
    %95 = vmatprep.subr.bf16.mxu0 0
    %96 = vmatpush1.bf16.xpose.msra.mxu0 %v79
    %97 = vmatprep.subr.bf16.mxu0 0
    %98 = vmatpush1.bf16.xpose.msra.mxu0 %v82
    %99 = vmatprep.subr.bf16.mxu0 0
    %100 = vmatpush1.bf16.xpose.msra.mxu0 %v85
    %101 = vmatprep.subr.bf16.mxu0 0
    %102 = vmatpush1.bf16.xpose.msra.mxu0 %v88
    %103 = vmatprep.subr.bf16.mxu0 0
    %104 = vmatpush1.bf16.xpose.msra.mxu0 %v91
    %105 = vmatprep.subr.bf16.mxu0 0
    %106 = vmatpush1.bf16.xpose.msra.mxu0 0
    %107 = vmatprep.subr.bf16.mxu0 0
    %108 = vmatpush1.bf16.xpose.msra.mxu0 0
    %109 = vmatprep.subr.bf16.mxu0 0
    %110 = vmatpush1.bf16.xpose.msra.mxu0 0
    %111 = vmatprep.subr.bf16.mxu0 0
    %112 = vmatpush1.bf16.xpose.msra.mxu0 0
    %113 = vmatprep.subr.bf16.mxu0 0
    %114 = vmatpush1.bf16.xpose.msra.mxu0 0
    %115 = vmatprep.subr.bf16.mxu0 0
    %116 = vmatpush1.bf16.xpose.msra.mxu0 0
    %117 = vmatprep.subr.bf16.mxu0 0
    %118 = vmatpush1.bf16.xpose.msra.mxu0 0
    %119 = vmatprep.subr.bf16.mxu0 0
    %120 = vmatpush1.bf16.xpose.msra.mxu0 0
    %121 = vmatprep.subr.bf16.mxu0 0
    %122 = vmatpush1.bf16.xpose.msra.mxu0 0
    %123 = vmatprep.subr.bf16.mxu0 0
    %124 = vmatpush1.bf16.xpose.msra.mxu0 0
    %125 = vmatprep.mubr.bf16.mxu0 0
    %126 = vmatmul.mubr.bf16.gmra.mrb[0].mxu0 %v73
    %v127 = vpop.f32.mrb[0].mxu0
    %v128 = vadd.f32 0.0, %v127
    %v129 = vpop.f32.mrb[0].mxu0
    %v130 = vpop.f32.mrb[0].mxu0
    %v131 = vadd.f32 0.0, %v130
    %v132 = vpop.f32.mrb[0].mxu0
    %133 = vdwg.mxu0
    %v134 = vadd.f32 %v20, %v128
    %v135 = vadd.f32 %v21, %v131
    %vm136 = vcmask 785408
    %137 = vst.msk [vmem:[#allocation2] sm:$0xff] %vm136, %v134
    %138 = vst.msk [vmem:[#allocation2 + $0x8] sm:$0xff] %vm136, %v135
    // Predicated region
    $region14: #{tpu_custom_call.1} parent=1 // pred_check
      %p139 = pneg %p13
    $region15: #{tpu_custom_call.1} parent=1 // pred_check_branch
      %141 = sbr.rel (%p139) target = $region17
    $region16: #{tpu_custom_call.1} parent=1 // pred_region
      %v142 = vld [vmem:[#allocation2] sm:$0xff]
      %v143 = vld [vmem:[#allocation2 + $0x8] sm:$0xff]
      %v144 = vpack.c.bf16 %v143, %v142
      %v146 = vunpack.c.l.b16 %v144
      %v147 = vunpack.c.h.b16 %v144
      %v148 = vpack.c.b16 %v146, %v146
      %v149 = vpack.c.b16 %v147, %v147
      %vm152 = vcmask 781312
      %153 = vst.msk [vmem:[#allocation3] sm:$0xf] %vm152, %v148
      %154 = vst.msk [vmem:[#allocation3 + $0x4] sm:$0xf] %vm152, %v149
    $region17: #{tpu_custom_call.1} parent=1 // pred_fallthru
      _
    // Predicated region
    $region18: #{tpu_custom_call.1} parent=1 // pred_check
      _
    $region19: #{tpu_custom_call.1} parent=1 // pred_check_branch
      %156 = sbr.rel (0) target = $region21
    $region20: #{tpu_custom_call.1} parent=1 // pred_region
      %s158 = ssub.s32 128, 128
      %159 = vsyncadd [#allocation4], %s158
      %s160 = sshll.u32 [#allocation3], 4
      %s161 = int_to_ptr.vmem [resolvable:$true] %s160
      %166 = dma.vmem_to_hbm [thread:$0]  %s161, 128, %s2, [#allocation4], 64, 64, 4
    $region21: #{tpu_custom_call.1} parent=1 // pred_fallthru
      _
    // Predicated region
    $region22: #{tpu_custom_call.1} parent=1 // pred_check
      _
    $region23: #{tpu_custom_call.1} parent=1 // pred_check_branch
      %168 = sbr.rel (0) target = $region25
    $region24: #{tpu_custom_call.1} parent=1 // pred_region
      %169 = dma.done [#allocation4], 128
    $region25: #{tpu_custom_call.1} parent=1 // pred_fallthru
      _
    %170 = vsyncpa [#allocation4], 1

</llo_original>
